<compile_context>
chip_gen: v5e
topology: v5e:2x2
jax: 0.10.0
libtpu: 0.0.40
codegen_flags: <defaults>
</compile_context>

<pallas_src>
import functools

import jax
import jax.numpy as jnp
from jax.experimental import pallas as pl
from jax.experimental.pallas import tpu as pltpu


def _make_qadd_kernel(sa, sb, bias, out_zp):
    """Build an elementwise quantized-add kernel with folded constants.

    y  = ((a - a_zp)*a_scale + (b - b_zp)*b_scale) / out_scale
       = a*sa + b*sb + bias
    q  = clamp(round(y) + out_zp, 0, 255)

    Note: out_zp is added AFTER the round (matches torch requant; folding it
    into bias would change round-half-to-even ties for odd zero points).
    """
    sa = float(sa)
    sb = float(sb)
    bias = float(bias)
    out_zp = float(out_zp)

    def kernel(a_ref, b_ref, o_ref):
        a = a_ref[...].astype(jnp.float32)
        b = b_ref[...].astype(jnp.float32)
        y = a * sa + b * sb
        if bias != 0.0:                       # trace-time constant guard
            y = y + bias
        q = jnp.round(y)                      # round-half-to-even (nearbyint)
        if out_zp != 0.0:                     # trace-time constant guard
            q = q + out_zp
        q = jnp.clip(q, 0.0, 255.0)           # must keep: f32->u8 doesn't saturate
        o_ref[...] = q.astype(jnp.uint8)

    return kernel


def _round_up(x, m):
    return (x + m - 1) // m * m


# Block sizing:
#  * SINGLE_BLOCK_ROWS: at or below this, run one block (grid=(1,)).
#  * MAX_BLOCK_ROWS: 4096 rows x 1024 lanes x u8 = 4 MiB per ref per block.
SINGLE_BLOCK_ROWS = 64
MAX_BLOCK_ROWS = 4096
# 3 refs x 2 pipeline buffers x 4 MiB = 24 MiB; request 48 MiB scoped VMEM
# (raises v5e's 16 MiB default; still < v7x's 64 MiB physical).
VMEM_LIMIT_BYTES = 48 << 20


@functools.partial(
    jax.jit,
    static_argnames=("a_scale", "a_zp", "b_scale", "b_zp", "out_scale", "out_zp"),
)
def quantized_add(a_q, b_q, *, a_scale, a_zp, b_scale, b_zp, out_scale, out_zp):
    """a_q, b_q: uint8 arrays of identical shape (quint8 repr). Returns uint8."""
    assert a_q.shape == b_q.shape
    assert a_q.dtype == jnp.uint8 and b_q.dtype == jnp.uint8
    orig_shape = a_q.shape
    n = a_q.size

    # Fold quantization constants once, in double precision (trace time).
    # (For the shipped module out_scale == 1.0, so this matches torch's
    # dequant-add-requant evaluation order exactly.)
    sa = float(a_scale) / float(out_scale)
    sb = float(b_scale) / float(out_scale)
    bias = -(float(a_zp) * float(a_scale) + float(b_zp) * float(b_scale)) / float(out_scale)

    # --- lane-dense 2-D slab ------------------------------------------------
    LANE = 128
    lane_width = None
    for cand in (1024, 512, 256, 128):
        if n % cand == 0:
            lane_width = cand
            break
    if lane_width is None:
        # TODO(synk): handle n % 128 tails without a full-array pad/slice
        # (e.g. a tiny second call for the tail); rare fallback path.
        lane_width = LANE
        n_pad = _round_up(n, LANE)
    else:
        n_pad = n                    # no pad copy needed

    rows = n_pad // lane_width

    # --- block sizing ---------------------------------------------------------
    if rows <= SINGLE_BLOCK_ROWS:
        # Tiny input: single block, no pipeline overhead.
        row_tile = rows
    else:
        # Split into >= 2 blocks so both v7x TensorCores stream ("parallel"
        # axis), capped at MAX_BLOCK_ROWS.  Multiple of 32 keeps the uint8
        # tiles fully packed; ragged last block is masked by the pipeline.
        half = -(-rows // 2)
        row_tile = min(MAX_BLOCK_ROWS, _round_up(half, 32))

    def to_slab(x):
        x = x.reshape(-1)
        if n_pad != n:
            x = jnp.pad(x, (0, n_pad - n))
        return x.reshape(rows, lane_width)

    a2 = to_slab(a_q)
    b2 = to_slab(b_q)

    grid = (pl.cdiv(rows, row_tile),)
    block = (row_tile, lane_width)

    kernel = _make_qadd_kernel(sa, sb, bias, float(out_zp))

    out2 = pl.pallas_call(
        kernel,
        out_shape=jax.ShapeDtypeStruct((rows, lane_width), jnp.uint8),
        grid=grid,
        in_specs=[
            pl.BlockSpec(block, lambda i: (i, 0)),
            pl.BlockSpec(block, lambda i: (i, 0)),
        ],
        out_specs=pl.BlockSpec(block, lambda i: (i, 0)),
        compiler_params=pltpu.CompilerParams(
            dimension_semantics=("parallel",),
            vmem_limit_bytes=VMEM_LIMIT_BYTES,
        ),
    )(a2, b2)

    out = out2.reshape(-1)
    if n_pad != n:
        out = out[:n]
    return out.reshape(orig_shape)


class AddQuantized:
    """JAX analogue of torch.nn.quantized.Add (output qparams held as buffers)."""

    def __init__(self):
        # Matches the PyTorch module buffers: scale=1.0 (double), zero_point=0 (long).
        self.scale = 1.0
        self.zero_point = 0

    def __call__(self, a_q, a_scale, a_zp, b_q, b_scale, b_zp):
        return quantized_add(
            a_q, b_q,
            a_scale=float(a_scale), a_zp=float(a_zp),
            b_scale=float(b_scale), b_zp=float(b_zp),
            out_scale=float(self.scale), out_zp=int(self.zero_point),
        )


def _reference(a_q, b_q, a_scale, a_zp, b_scale, b_zp, out_scale, out_zp):
    a_fp = (a_q.astype(jnp.float32) - a_zp) * a_scale
    b_fp = (b_q.astype(jnp.float32) - b_zp) * b_scale
    q = jnp.round((a_fp + b_fp) / out_scale) + out_zp
    return jnp.clip(q, 0, 255).astype(jnp.uint8)


if __name__ == "__main__":
    key = jax.random.PRNGKey(0)
    k1, k2 = jax.random.split(key)

    # Small NCHW inputs consistent with an elementwise quantized add.
    shape = (2, 4, 16, 16)

    # Power-of-two input scales and integer zero points: every intermediate of
    # the dequant/add/requant is exactly representable in float32, so the
    # Pallas kernel result is bit-identical to the op-by-op reference on every
    # backend (no 1-ulp / rounding-tie sensitivity).
    a_scale, a_zp = 0.0625, 128
    b_scale, b_zp = 0.125, 112

    a_q = jax.random.randint(k1, shape, 0, 256, dtype=jnp.int32).astype(jnp.uint8)
    b_q = jax.random.randint(k2, shape, 0, 256, dtype=jnp.int32).astype(jnp.uint8)

    mod = AddQuantized()
    out = mod(a_q, a_scale, a_zp, b_q, b_scale, b_zp)
    out = jax.block_until_ready(out)

    ref = _reference(a_q, b_q, a_scale, a_zp, b_scale, b_zp,
                     float(mod.scale), float(mod.zero_point))
    assert out.shape == shape and out.dtype == jnp.uint8
    assert bool(jnp.all(out == ref)), "mismatch vs reference quantized add"

    print("KERNEL_OK")
</pallas_src>

<mosaic_0001>
module attributes {stable_mosaic.version = 11 : i64} {
  func.func @kernel(%arg0: i32, %arg1: memref<2x1024xi8, #tpu.memory_space<vmem>>, %arg2: memref<2x1024xi8, #tpu.memory_space<vmem>>, %arg3: memref<2x1024xi8, #tpu.memory_space<vmem>>) attributes {dimension_semantics = [#tpu.dimension_semantics<parallel>], iteration_bounds = array<i64: 1>, scalar_prefetch = 0 : i64, scratch_operands = 0 : i64, tpu.core_type = #tpu.core_type<tc>, window_params = [{transform_indices = @transform_0, window_bounds = array<i64: 2, 1024>}, {transform_indices = @transform_1, window_bounds = array<i64: 2, 1024>}, {transform_indices = @transform_2, window_bounds = array<i64: 2, 1024>}]} {
    %c0 = arith.constant 0 : index
    %c0_0 = arith.constant 0 : index
    %0 = vector.load %arg1[%c0, %c0_0] : memref<2x1024xi8, #tpu.memory_space<vmem>>, vector<2x1024xi8>
    %1 = arith.uitofp %0 : vector<2x1024xi8> to vector<2x1024xf32>
    %c0_1 = arith.constant 0 : index
    %c0_2 = arith.constant 0 : index
    %2 = vector.load %arg2[%c0_1, %c0_2] : memref<2x1024xi8, #tpu.memory_space<vmem>>, vector<2x1024xi8>
    %3 = arith.uitofp %2 : vector<2x1024xi8> to vector<2x1024xf32>
    %cst = arith.constant 6.250000e-02 : f32
    %4 = vector.broadcast %cst : f32 to vector<2x1024xf32>
    %5 = arith.mulf %1, %4 : vector<2x1024xf32>
    %cst_3 = arith.constant 1.250000e-01 : f32
    %6 = vector.broadcast %cst_3 : f32 to vector<2x1024xf32>
    %7 = arith.mulf %3, %6 : vector<2x1024xf32>
    %8 = arith.addf %5, %7 : vector<2x1024xf32>
    %cst_4 = arith.constant -2.200000e+01 : f32
    %9 = vector.broadcast %cst_4 : f32 to vector<2x1024xf32>
    %10 = arith.addf %8, %9 : vector<2x1024xf32>
    %11 = math.roundeven %10 : vector<2x1024xf32>
    %cst_5 = arith.constant 0.000000e+00 : f32
    %cst_6 = arith.constant 2.550000e+02 : f32
    %12 = vector.broadcast %cst_5 : f32 to vector<2x1024xf32>
    %13 = arith.maximumf %12, %11 : vector<2x1024xf32>
    %14 = vector.broadcast %cst_6 : f32 to vector<2x1024xf32>
    %15 = arith.minimumf %14, %13 : vector<2x1024xf32>
    %16 = arith.fptoui %15 : vector<2x1024xf32> to vector<2x1024xi8>
    %c0_7 = arith.constant 0 : index
    %c0_8 = arith.constant 0 : index
    %17 = vector.load %arg3[%c0_7, %c0_8] : memref<2x1024xi8, #tpu.memory_space<vmem>>, vector<2x1024xi8>
    tpu.vector_store %arg3[%c0_7, %c0_8], %16 {strides = array<i32>} : memref<2x1024xi8, #tpu.memory_space<vmem>>, vector<2x1024xi8>,
    return
  }
  func.func @transform_0(%arg0: i32) -> (i32, i32) {
    %c0_i32 = arith.constant 0 : i32
    %c0_i32_0 = arith.constant 0 : i32
    return %arg0, %c0_i32 : i32, i32
  }
  func.func @transform_1(%arg0: i32) -> (i32, i32) {
    %c0_i32 = arith.constant 0 : i32
    %c0_i32_0 = arith.constant 0 : i32
    return %arg0, %c0_i32 : i32, i32
  }
  func.func @transform_2(%arg0: i32) -> (i32, i32) {
    %c0_i32 = arith.constant 0 : i32
    %c0_i32_0 = arith.constant 0 : i32
    return %arg0, %c0_i32 : i32, i32
  }
}

</mosaic_0001>

<llo_original>
// kernel: quantized_add.1
$region0: #{quantized_add.1}
  #allocation0 [shape = 'u32[]', space=smem, size = 0x4, offset = 0x4, fixed_abs, tag = 'smem constant byte address 0x4 - core index']
  #allocation1 [shape = 'u32[72,128]{1,0:T(1,128)}', space=vmem, size = 0x9000, scoped, tag = 'internal scratch']
  %s0 = inlined_call_operand.vmem [shape: u8[2,1024], index: 0, kind: input, shape index: {}]
  %s1 = inlined_call_operand.vmem [shape: u8[2,1024], index: 1, kind: input, shape index: {}]
  %s2 = inlined_call_operand.vmem [shape: u8[2,1024], index: 2, kind: output, shape index: {}]
  %s3 = sld [smem:[#allocation0]]
  $region18: #{quantized_add.1} parent=0
    _
  %s5 = ssub.s32 1, %s3
  %s6 = scalar_select 0, %s5, %s3
  // Predicated region
  $region2: #{quantized_add.1} parent=0 // pred_check
    _
  $region3: #{quantized_add.1} parent=0 // pred_check_branch
    %8 = sbr.rel (0) target = $region5
  $region4: #{quantized_add.1} parent=0 // pred_region
    _
  $region5: #{quantized_add.1} parent=0 // pred_fallthru
    _
  // Predicated region
  $region6: #{quantized_add.1} parent=0 // pred_check
    _
  $region7: #{quantized_add.1} parent=0 // pred_check_branch
    %10 = sbr.rel (0) target = $region9
  $region8: #{quantized_add.1} parent=0 // pred_region
    _
  $region9: #{quantized_add.1} parent=0 // pred_fallthru
    _
  %v11 = vld [vmem:[%s0] sm:$0xff]
  %v12 = vunpack.c.0.s8 %v11
  %v13 = vunpack.c.1.s8 %v11
  %v14 = vunpack.c.2.s8 %v11
  %v15 = vunpack.c.3.s8 %v11
  %v16 = vand.u32 %v12, 255
  %v17 = vand.u32 %v13, 255
  %v18 = vand.u32 %v14, 255
  %v19 = vand.u32 %v15, 255
  %v20 = vcvt.s32.f32 %v16
  %v21 = vcvt.s32.f32 %v17
  %v22 = vcvt.s32.f32 %v18
  %v23 = vcvt.s32.f32 %v19
  %v24 = vld [vmem:[%s1] sm:$0xff]
  %v25 = vunpack.c.0.s8 %v24
  %v26 = vunpack.c.1.s8 %v24
  %v27 = vunpack.c.2.s8 %v24
  %v28 = vunpack.c.3.s8 %v24
  %v29 = vand.u32 %v25, 255
  %v30 = vand.u32 %v26, 255
  %v31 = vand.u32 %v27, 255
  %v32 = vand.u32 %v28, 255
  %v33 = vcvt.s32.f32 %v29
  %v34 = vcvt.s32.f32 %v30
  %v35 = vcvt.s32.f32 %v31
  %v36 = vcvt.s32.f32 %v32
  %v37 = vmul.f32 %v20, 0.0625
  %v38 = vmul.f32 %v21, 0.0625
  %v39 = vmul.f32 %v22, 0.0625
  %v40 = vmul.f32 %v23, 0.0625
  %v41 = vmul.f32 %v33, 0.125
  %v42 = vmul.f32 %v34, 0.125
  %v43 = vmul.f32 %v35, 0.125
  %v44 = vmul.f32 %v36, 0.125
  %v45 = vadd.f32 %v37, %v41
  %v46 = vadd.f32 %v38, %v42
  %v47 = vadd.f32 %v39, %v43
  %v48 = vadd.f32 %v40, %v44
  %v49 = vadd.f32 %v45, -22.0
  %v50 = vadd.f32 %v46, -22.0
  %v51 = vadd.f32 %v47, -22.0
  %v52 = vadd.f32 %v48, -22.0
  %v53 = vround.ne.pseudo %v49
  %v54 = vround.ne.pseudo %v50
  %v55 = vround.ne.pseudo %v51
  %v56 = vround.ne.pseudo %v52
  %v57 = vmax.f32 %v53, 0.0
  %v58 = vmax.f32 %v54, 0.0
  %v59 = vmax.f32 %v55, 0.0
  %v60 = vmax.f32 %v56, 0.0
  %v61 = vmin.f32 %v57, 255.0
  %v62 = vmin.f32 %v58, 255.0
  %v63 = vmin.f32 %v59, 255.0
  %v64 = vmin.f32 %v60, 255.0
  %v65 = vmax.f32 %v61, 0.0
  %v66 = vmax.f32 %v62, 0.0
  %v67 = vmax.f32 %v63, 0.0
  %v68 = vmax.f32 %v64, 0.0
  %v69 = vmin.f32 %v65, 255.0
  %v70 = vmin.f32 %v66, 255.0
  %v71 = vmin.f32 %v67, 255.0
  %v72 = vmin.f32 %v68, 255.0
  %v73 = vcvt.f32.s32.to.zero.pseudo %v69
  %v74 = vcvt.f32.s32.to.zero.pseudo %v70
  %v75 = vcvt.f32.s32.to.zero.pseudo %v71
  %v76 = vcvt.f32.s32.to.zero.pseudo %v72
  %77 = vst [vmem:[#allocation1] ss:$2 sm:$0xff] %v73
  %s78 = scalar_lea.vmem [#allocation1], 16
  %79 = vst [vmem:[%s78] ss:$2 sm:$0xff] %v74
  %s80 = scalar_lea.vmem [#allocation1], 32
  %81 = vst [vmem:[%s80] ss:$2 sm:$0xff] %v75
  %s82 = scalar_lea.vmem [#allocation1], 48
  %83 = vst [vmem:[%s82] ss:$2 sm:$0xff] %v76
  %v84 = vld.sshfl [vmem:[#allocation1] sm:$0xff pattern:$0x75316420]
  %v85 = vld.sshfl [vmem:[#allocation1 + $0x8] sm:$0xff pattern:$0x75316420]
  %v86 = vld.sshfl [vmem:[#allocation1 + $0x10] sm:$0xff pattern:$0x75316420]
  %v87 = vld.sshfl [vmem:[#allocation1 + $0x18] sm:$0xff pattern:$0x75316420]
  %v88 = vld.sshfl [vmem:[#allocation1 + $0x20] sm:$0xff pattern:$0x75316420]
  %v89 = vld.sshfl [vmem:[#allocation1 + $0x28] sm:$0xff pattern:$0x75316420]
  %v90 = vld.sshfl [vmem:[#allocation1 + $0x30] sm:$0xff pattern:$0x75316420]
  %v91 = vld.sshfl [vmem:[#allocation1 + $0x38] sm:$0xff pattern:$0x75316420]
  %v92 = vpack.c.b16 %v84, %v84
  %v93 = vpack.c.b8 %v92, %v92
  %v94 = vpack.c.b16 %v85, %v85
  %v95 = vpack.c.b8 %v94, %v94
  %v96 = vpack.c.b16 %v86, %v86
  %v97 = vpack.c.b8 %v96, %v96
  %v98 = vpack.c.b16 %v87, %v87
  %v99 = vpack.c.b8 %v98, %v98
  %v100 = vpack.c.b16 %v88, %v88
  %v101 = vpack.c.b8 %v100, %v100
  %v102 = vpack.c.b16 %v89, %v89
  %v103 = vpack.c.b8 %v102, %v102
  %v104 = vpack.c.b16 %v90, %v90
  %v105 = vpack.c.b8 %v104, %v104
  %v106 = vpack.c.b16 %v91, %v91
  %v107 = vpack.c.b8 %v106, %v106
  %v108 = vrot.slane %v95, 7
  %v109 = vrot.slane %v97, 6
  %v110 = vrot.slane %v99, 5
  %v111 = vrot.slane %v101, 4
  %v112 = vrot.slane %v103, 3
  %v113 = vrot.slane %v105, 2
  %v114 = vrot.slane %v107, 1
  %vm115 = vcmask 1040384
  %v118 = vsel %vm115, %v93, %v108
  %vm119 = vcmask 1042434
  %v122 = vsel %vm119, %v109, %v110
  %vm123 = vcmask 1041408
  %v124 = vsel %vm123, %v118, %v122
  %vm125 = vcmask 1044484
  %v128 = vsel %vm125, %v111, %v112
  %vm129 = vcmask 1046534
  %v132 = vsel %vm129, %v113, %v114
  %vm133 = vcmask 1045508
  %v134 = vsel %vm133, %v128, %v132
  %vm135 = vcmask 1043456
  %v136 = vsel %vm135, %v124, %v134
  %vm138 = vcmask 1040384
  %vm139 = vsmask.f32 256
  %vm140 = vmand %vm138, %vm139
  %vm141 = vcmask 1041409
  %vm142 = vsmask.f32 1280
  %vm143 = vmand %vm141, %vm142
  %vm144 = vmor %vm143, %vm140
  %vm145 = vcmask 1042434
  %vm146 = vsmask.f32 2304
  %vm147 = vmand %vm145, %vm146
  %vm148 = vmor %vm147, %vm144
  %vm149 = vcmask 1043459
  %vm150 = vsmask.f32 3328
  %vm151 = vmand %vm149, %vm150
  %vm152 = vmor %vm151, %vm148
  %vm153 = vcmask 1044484
  %vm154 = vsmask.f32 4352
  %vm155 = vmand %vm153, %vm154
  %vm156 = vmor %vm155, %vm152
  %vm157 = vcmask 1045509
  %vm158 = vsmask.f32 5376
  %vm159 = vmand %vm157, %vm158
  %vm160 = vmor %vm159, %vm156
  %vm161 = vcmask 1046534
  %vm162 = vsmask.f32 6400
  %vm163 = vmand %vm161, %vm162
  %vm164 = vmor %vm163, %vm160
  %vm165 = vcmask 1047559
  %vm166 = vsmask.f32 7424
  %vm167 = vmand %vm165, %vm166
  %vm168 = vmor %vm167, %vm164
  %v169 = vld [vmem:[%s2] sm:$0xff]
  %v170 = vsel %vm168, %v136, %v169
  %171 = vst [vmem:[%s2] sm:$0xff] %v170
  // Predicated region
  $region10: #{quantized_add.1} parent=0 // pred_check
    _
  $region11: #{quantized_add.1} parent=0 // pred_check_branch
    %173 = sbr.rel (0) target = $region13
  $region12: #{quantized_add.1} parent=0 // pred_region
    _
  $region13: #{quantized_add.1} parent=0 // pred_fallthru
    _
  // Predicated region
  $region14: #{quantized_add.1} parent=0 // pred_check
    _
  $region15: #{quantized_add.1} parent=0 // pred_check_branch
    %175 = sbr.rel (0) target = $region17
  $region16: #{quantized_add.1} parent=0 // pred_region
    _
  $region17: #{quantized_add.1} parent=0 // pred_fallthru
    _

</llo_original>
